<compile_context>
chip_gen: v5e
topology: v5e:2x2
jax: 0.10.0
libtpu: 0.0.40
codegen_flags: <defaults>
</compile_context>

<pallas_src>
import functools

import jax
import jax.numpy as jnp
from jax.experimental import pallas as pl
from jax.experimental.pallas import tpu as pltpu

LANE = 128
_MIB = 1024 * 1024


def _round_up(x, m):
    return (x + m - 1) // m * m


# --------------------------------------------------------------------------
# Path A: fully fused multi-layer kernel (small graphs, everything in VMEM).
# --------------------------------------------------------------------------
def _fused_sage_kernel(*refs, num_layers):
    a_ref, x_ref = refs[0], refs[1]
    o_ref = refs[-1]
    p_refs = refs[2:-1]              # wl_0, wr_0, b_0, wl_1, wr_1, b_1, ...

    a = a_ref[...]
    h = x_ref[...]
    for li in range(num_layers):
        wl = p_refs[3 * li][...]
        wr = p_refs[3 * li + 1][...]
        b = p_refs[3 * li + 2][...]
        # Y in bf16 for the MXU A @ Y matmul; Z (root + bias) stays f32.
        y = jnp.dot(h, wl, preferred_element_type=jnp.float32).astype(jnp.bfloat16)
        z = jnp.dot(h, wr, preferred_element_type=jnp.float32) + b
        out = jnp.dot(a, y, preferred_element_type=jnp.float32) + z
        if li != num_layers - 1:
            out = jnp.maximum(out, 0.0)          # ReLU; dropout = identity (eval)
            h = out.astype(jnp.bfloat16)
        else:
            o_ref[...] = out


def _sage_fused(a_pad, x_pad, padded_params, *, vmem_limit):
    n_pad = a_pad.shape[0]
    fout_pad = padded_params[-1][0].shape[1]
    num_layers = len(padded_params)

    flat = []
    in_specs = [
        pl.BlockSpec((n_pad, n_pad), lambda i: (0, 0)),
        pl.BlockSpec((n_pad, x_pad.shape[1]), lambda i: (0, 0)),
    ]
    for wl, wr, b2 in padded_params:
        flat += [wl, wr, b2]
        in_specs += [
            pl.BlockSpec(wl.shape, lambda i: (0, 0)),
            pl.BlockSpec(wr.shape, lambda i: (0, 0)),
            pl.BlockSpec(b2.shape, lambda i: (0, 0)),
        ]

    kernel = functools.partial(_fused_sage_kernel, num_layers=num_layers)
    return pl.pallas_call(
        kernel,
        out_shape=jax.ShapeDtypeStruct((n_pad, fout_pad), jnp.float32),
        grid_spec=pltpu.PrefetchScalarGridSpec(
            num_scalar_prefetch=0,
            grid=(1,),
            in_specs=in_specs,
            out_specs=pl.BlockSpec((n_pad, fout_pad), lambda i: (0, 0)),
        ),
        compiler_params=pltpu.CompilerParams(
            dimension_semantics=("arbitrary",),
            vmem_limit_bytes=int(vmem_limit),
        ),
    )(a_pad, x_pad, *flat)


# --------------------------------------------------------------------------
# Path B, step 1: per-layer prologue  Y = X @ W_l (bf16),  Z = X @ W_r + b (f32)
# --------------------------------------------------------------------------
def _yz_kernel(x_ref, wl_ref, wr_ref, b_ref, y_ref, z_ref):
    x = x_ref[...]
    y_ref[...] = jnp.dot(x, wl_ref[...],
                         preferred_element_type=jnp.float32).astype(y_ref.dtype)
    z_ref[...] = (jnp.dot(x, wr_ref[...], preferred_element_type=jnp.float32)
                  + b_ref[...])


def _sage_yz(x_pad, wl, wr, b2, *, tm):
    n_pad, fin_pad = x_pad.shape
    fout_pad = wl.shape[1]
    grid = (n_pad // tm,)

    # VMEM accounting (double-buffered inputs/outputs) + slack.
    needed = (2 * (tm * fin_pad * 2
                   + 2 * fin_pad * fout_pad * 2
                   + tm * fout_pad * 2
                   + tm * fout_pad * 4)
              + 4 * _MIB)
    # TODO(synk): W_l/W_r/bias have constant index maps; single-buffer them
    # (pipeline_mode=pl.Buffered(1)) to halve their footprint on v7x.
    return pl.pallas_call(
        _yz_kernel,
        out_shape=(jax.ShapeDtypeStruct((n_pad, fout_pad), jnp.bfloat16),
                   jax.ShapeDtypeStruct((n_pad, fout_pad), jnp.float32)),
        grid_spec=pltpu.PrefetchScalarGridSpec(
            num_scalar_prefetch=0,
            grid=grid,
            in_specs=[
                pl.BlockSpec((tm, fin_pad), lambda i: (i, 0)),        # X row tile
                pl.BlockSpec((fin_pad, fout_pad), lambda i: (0, 0)),  # W_l
                pl.BlockSpec((fin_pad, fout_pad), lambda i: (0, 0)),  # W_r
                pl.BlockSpec((1, fout_pad), lambda i: (0, 0)),        # bias
            ],
            out_specs=[
                pl.BlockSpec((tm, fout_pad), lambda i: (i, 0)),       # Y
                pl.BlockSpec((tm, fout_pad), lambda i: (i, 0)),       # Z
            ],
        ),
        compiler_params=pltpu.CompilerParams(
            dimension_semantics=("parallel",),
            vmem_limit_bytes=int(max(needed, 32 * _MIB)),
        ),
    )(x_pad, wl, wr, b2)


# --------------------------------------------------------------------------
# Path B, step 2: tiled aggregation  out = relu?(A_mean @ Y + Z)
# --------------------------------------------------------------------------
def _aggregate_kernel(a_ref, y_ref, z_ref, o_ref, acc_ref, *,
                      apply_relu, tk, resident_y):
    k = pl.program_id(1)

    @pl.when(k == 0)
    def _():
        acc_ref[...] = jnp.zeros_like(acc_ref)

    if resident_y:
        start = pl.multiple_of(k * tk, 128)
        y = y_ref[pl.ds(start, tk), :]
    else:
        y = y_ref[...]
    acc_ref[...] += jnp.dot(a_ref[...], y, preferred_element_type=jnp.float32)

    @pl.when(k == pl.num_programs(1) - 1)
    def _():
        out = acc_ref[...] + z_ref[...]
        if apply_relu:
            out = jnp.maximum(out, 0.0)
        o_ref[...] = out.astype(o_ref.dtype)


def _sage_aggregate(a_pad, y, z, *, apply_relu, tm, tk, out_dtype):
    n_pad = a_pad.shape[0]
    fout_pad = y.shape[1]
    grid = (n_pad // tm, n_pad // tk)

    # Keep Y fully VMEM-resident when cheap: removes the (n_pad/tm)x
    # re-streaming of Y from HBM per row tile.
    resident_y = 2 * n_pad * fout_pad * 2 <= 8 * _MIB
    if resident_y:
        y_spec = pl.BlockSpec((n_pad, fout_pad), lambda i, k: (0, 0))
        y_bytes = 2 * n_pad * fout_pad * 2
    else:
        y_spec = pl.BlockSpec((tk, fout_pad), lambda i, k: (k, 0))
        y_bytes = 2 * tk * fout_pad * 2

    out_itemsize = 4 if out_dtype == jnp.float32 else 2
    needed = (2 * tm * tk * 2                     # A tiles (double-buffered)
              + y_bytes                           # Y
              + 2 * tm * fout_pad * 4             # Z tiles (f32)
              + 2 * tm * fout_pad * out_itemsize  # out tiles
              + tm * fout_pad * 4                 # f32 accumulator
              + 4 * _MIB)                         # slack
    vmem_limit = int(min(max(needed, 32 * _MIB), 48 * _MIB))  # v7x-safe cap

    kernel = functools.partial(_aggregate_kernel, apply_relu=apply_relu,
                               tk=tk, resident_y=resident_y)
    return pl.pallas_call(
        kernel,
        out_shape=jax.ShapeDtypeStruct((n_pad, fout_pad), out_dtype),
        grid_spec=pltpu.PrefetchScalarGridSpec(
            num_scalar_prefetch=0,
            grid=grid,
            in_specs=[
                pl.BlockSpec((tm, tk), lambda i, k: (i, k)),        # A_mean tile
                y_spec,                                             # Y = X @ W_l
                pl.BlockSpec((tm, fout_pad), lambda i, k: (i, 0)),  # Z = X@W_r + b
            ],
            out_specs=pl.BlockSpec((tm, fout_pad), lambda i, k: (i, 0)),
            scratch_shapes=[pltpu.VMEM((tm, fout_pad), jnp.float32)],
        ),
        compiler_params=pltpu.CompilerParams(
            dimension_semantics=("parallel", "arbitrary"),
            vmem_limit_bytes=vmem_limit,
        ),
    )(a_pad, y, z)


# --------------------------------------------------------------------------
# Forward pass mirroring SAGE.forward (eval mode).
# --------------------------------------------------------------------------
def _pad_params(params):
    padded = []
    for wl, wr, b in params:
        fin, fout = wl.shape
        fin_pad = _round_up(fin, LANE)
        fout_pad = _round_up(fout, LANE)
        wl_p = jnp.pad(wl, ((0, fin_pad - fin), (0, fout_pad - fout))).astype(jnp.bfloat16)
        wr_p = jnp.pad(wr, ((0, fin_pad - fin), (0, fout_pad - fout))).astype(jnp.bfloat16)
        b_p = jnp.pad(b, (0, fout_pad - fout)).reshape(1, fout_pad).astype(jnp.float32)
        padded.append((wl_p, wr_p, b_p))
    return padded


def _fused_footprint_bytes(n_pad, fin_pad0, padded_params):
    fmax = max([fin_pad0] + [p[0].shape[1] for p in padded_params])
    in_bytes = n_pad * n_pad * 2 + n_pad * fin_pad0 * 2
    for wl, wr, b2 in padded_params:
        in_bytes += wl.size * 2 + wr.size * 2 + b2.size * 4
    out_bytes = n_pad * padded_params[-1][0].shape[1] * 4
    interm = 3 * n_pad * fmax * 4
    return 2 * (in_bytes + out_bytes) + interm


def _tiled_plan(n):
    # No more padding N to 512: pad to 256 (waste bounded).
    n_pad = _round_up(n, 256)
    # Row tiles: 512 for large graphs (cuts Y re-streaming when not resident),
    # otherwise 256 so grid axis 0 keeps >= 2 tiles (megacore on v7x).
    tm = 512 if (n_pad % 512 == 0 and n_pad >= 2048) else 256
    for tk in (1024, 512, 256):
        if n_pad % tk == 0:
            break
    return n_pad, tm, tk


def sage_forward(x, adj_mean, params, *, force_tiled=False):
    """SAGE.forward in eval mode (F.dropout(training=False) = identity)."""
    n, f_in = x.shape
    fin_pad0 = _round_up(f_in, LANE)
    padded_params = _pad_params(params)
    f_out = params[-1][0].shape[1]
    num_layers = len(params)

    # --- Path A: fully fused single pallas_call (small graphs) -------------
    n_pad_small = _round_up(n, LANE)
    fp = _fused_footprint_bytes(n_pad_small, fin_pad0, padded_params)
    if (not force_tiled) and n_pad_small <= 1024 and fp <= 20 * _MIB:
        a_pad = jnp.pad(adj_mean, ((0, n_pad_small - n),) * 2).astype(jnp.bfloat16)
        x_pad = jnp.pad(x, ((0, n_pad_small - n), (0, fin_pad0 - f_in))).astype(jnp.bfloat16)
        vmem_limit = min(max(fp + 8 * _MIB, 32 * _MIB), 40 * _MIB)
        out = _sage_fused(a_pad, x_pad, padded_params, vmem_limit=vmem_limit)
        return out[:n, :f_out]

    # --- Path B: per-layer Y/Z prologue + tiled A @ Y aggregation ----------
    n_pad, tm, tk = _tiled_plan(n)
    a_pad = jnp.pad(adj_mean, ((0, n_pad - n),) * 2).astype(jnp.bfloat16)
    h = jnp.pad(x, ((0, n_pad - n), (0, fin_pad0 - f_in))).astype(jnp.bfloat16)
    for li, (wl, wr, b2) in enumerate(padded_params):
        last = li == num_layers - 1
        y, z = _sage_yz(h, wl, wr, b2, tm=tm)
        h = _sage_aggregate(a_pad, y, z, apply_relu=not last, tm=tm, tk=tk,
                            out_dtype=jnp.float32 if last else jnp.bfloat16)
        # F.dropout(p=dropout, training=False) -> identity at inference.
    return h[:n, :f_out]


# --------------------------------------------------------------------------
# Plain-JAX reference with matching dtype casts / computation order.
# --------------------------------------------------------------------------
def sage_reference(x, adj_mean, params):
    a = adj_mean.astype(jnp.bfloat16)
    h = x.astype(jnp.bfloat16)
    out = None
    for li, (wl, wr, b) in enumerate(params):
        y = jnp.dot(h, wl.astype(jnp.bfloat16),
                    preferred_element_type=jnp.float32).astype(jnp.bfloat16)
        z = jnp.dot(h, wr.astype(jnp.bfloat16),
                    preferred_element_type=jnp.float32) + b
        out = jnp.dot(a, y, preferred_element_type=jnp.float32) + z
        if li != len(params) - 1:
            h = jnp.maximum(out, 0.0).astype(jnp.bfloat16)
    return out


def make_params(key, in_channels, hidden_channels, out_channels, num_layers):
    """Per-layer (W_l, W_r, b) matching SAGEConv lin_l / lin_r / bias shapes."""
    dims = [in_channels] + [hidden_channels] * (num_layers - 1) + [out_channels]
    params = []
    for li in range(num_layers):
        key, k1, k2, k3 = jax.random.split(key, 4)
        fan_in, fan_out = dims[li], dims[li + 1]
        scale = jnp.sqrt(6.0 / (fan_in + fan_out))
        wl = jax.random.uniform(k1, (fan_in, fan_out), jnp.float32, -scale, scale)
        wr = jax.random.uniform(k2, (fan_in, fan_out), jnp.float32, -scale, scale)
        b = 0.01 * jax.random.normal(k3, (fan_out,), jnp.float32)
        params.append((wl, wr, b))
    return params


def make_mean_adj(key, n):
    """Dense row-normalized (mean-aggregation) adjacency, no self loops."""
    a = (jax.random.uniform(key, (n, n)) < 0.2).astype(jnp.float32)
    a = jnp.maximum(a, a.T)                 # symmetrize
    a = a * (1.0 - jnp.eye(n))              # SAGE aggregates neighbors only
    deg = jnp.sum(a, axis=1)
    return a / jnp.maximum(deg, 1.0)[:, None]


if __name__ == "__main__":
    in_channels, hidden_channels, out_channels = 16, 32, 8
    num_layers = 3
    dropout = 0.5  # identity at inference

    key = jax.random.PRNGKey(0)

    # --- Test 1: small graph -> fused single-kernel path -------------------
    N = 64
    kx, kadj, kp, key = jax.random.split(key, 4)
    x = jax.random.normal(kx, (N, in_channels), jnp.float32)
    adj_mean = make_mean_adj(kadj, N)
    params = make_params(kp, in_channels, hidden_channels, out_channels, num_layers)

    out = jax.block_until_ready(jax.jit(sage_forward)(x, adj_mean, params))
    assert out.shape == (N, out_channels), out.shape
    ref = sage_reference(x, adj_mean, params)
    assert jnp.allclose(out, ref, atol=1e-2, rtol=1e-2), (
        float(jnp.max(jnp.abs(out - ref))))

    # --- Test 2: tiled path (Y/Z prologue + A@Y accumulation grid) ---------
    N2 = 600
    kx2, kadj2, kp2, key = jax.random.split(key, 4)
    x2 = jax.random.normal(kx2, (N2, in_channels), jnp.float32)
    adj2 = make_mean_adj(kadj2, N2)
    params2 = make_params(kp2, in_channels, hidden_channels, out_channels, num_layers)

    fwd_tiled = jax.jit(functools.partial(sage_forward, force_tiled=True))
    out2 = jax.block_until_ready(fwd_tiled(x2, adj2, params2))
    assert out2.shape == (N2, out_channels), out2.shape
    ref2 = sage_reference(x2, adj2, params2)
    assert jnp.allclose(out2, ref2, atol=1e-2, rtol=1e-2), (
        float(jnp.max(jnp.abs(out2 - ref2))))

    print("KERNEL_OK")
</pallas_src>

<mosaic_0001>
module attributes {stable_mosaic.version = 11 : i64} {
  func.func @_fused_sage_kernel(%arg0: i32, %arg1: memref<128x128xbf16, #tpu.memory_space<vmem>>, %arg2: memref<128x128xbf16, #tpu.memory_space<vmem>>, %arg3: memref<128x128xbf16, #tpu.memory_space<vmem>>, %arg4: memref<128x128xbf16, #tpu.memory_space<vmem>>, %arg5: memref<1x128xf32, #tpu.memory_space<vmem>>, %arg6: memref<128x128xbf16, #tpu.memory_space<vmem>>, %arg7: memref<128x128xbf16, #tpu.memory_space<vmem>>, %arg8: memref<1x128xf32, #tpu.memory_space<vmem>>, %arg9: memref<128x128xbf16, #tpu.memory_space<vmem>>, %arg10: memref<128x128xbf16, #tpu.memory_space<vmem>>, %arg11: memref<1x128xf32, #tpu.memory_space<vmem>>, %arg12: memref<128x128xf32, #tpu.memory_space<vmem>>) attributes {dimension_semantics = [#tpu.dimension_semantics<arbitrary>], iteration_bounds = array<i64: 1>, scalar_prefetch = 0 : i64, scratch_operands = 0 : i64, tpu.core_type = #tpu.core_type<tc>, window_params = [{pipeline_mode = #tpu.pipeline_mode<synchronous>, transform_indices = @transform_0, window_bounds = array<i64: 128, 128>}, {pipeline_mode = #tpu.pipeline_mode<synchronous>, transform_indices = @transform_1, window_bounds = array<i64: 128, 128>}, {pipeline_mode = #tpu.pipeline_mode<synchronous>, transform_indices = @transform_2, window_bounds = array<i64: 128, 128>}, {pipeline_mode = #tpu.pipeline_mode<synchronous>, transform_indices = @transform_3, window_bounds = array<i64: 128, 128>}, {pipeline_mode = #tpu.pipeline_mode<synchronous>, transform_indices = @transform_4, window_bounds = array<i64: 1, 128>}, {pipeline_mode = #tpu.pipeline_mode<synchronous>, transform_indices = @transform_5, window_bounds = array<i64: 128, 128>}, {pipeline_mode = #tpu.pipeline_mode<synchronous>, transform_indices = @transform_6, window_bounds = array<i64: 128, 128>}, {pipeline_mode = #tpu.pipeline_mode<synchronous>, transform_indices = @transform_7, window_bounds = array<i64: 1, 128>}, {pipeline_mode = #tpu.pipeline_mode<synchronous>, transform_indices = @transform_8, window_bounds = array<i64: 128, 128>}, {pipeline_mode = #tpu.pipeline_mode<synchronous>, transform_indices = @transform_9, window_bounds = array<i64: 128, 128>}, {pipeline_mode = #tpu.pipeline_mode<synchronous>, transform_indices = @transform_10, window_bounds = array<i64: 1, 128>}, {pipeline_mode = #tpu.pipeline_mode<synchronous>, transform_indices = @transform_11, window_bounds = array<i64: 128, 128>}]} {
    %c0 = arith.constant 0 : index
    %c0_0 = arith.constant 0 : index
    %0 = vector.load %arg1[%c0, %c0_0] : memref<128x128xbf16, #tpu.memory_space<vmem>>, vector<128x128xbf16>
    %c0_1 = arith.constant 0 : index
    %c0_2 = arith.constant 0 : index
    %1 = vector.load %arg2[%c0_1, %c0_2] : memref<128x128xbf16, #tpu.memory_space<vmem>>, vector<128x128xbf16>
    %c0_3 = arith.constant 0 : index
    %c0_4 = arith.constant 0 : index
    %2 = vector.load %arg3[%c0_3, %c0_4] : memref<128x128xbf16, #tpu.memory_space<vmem>>, vector<128x128xbf16>
    %c0_5 = arith.constant 0 : index
    %c0_6 = arith.constant 0 : index
    %3 = vector.load %arg4[%c0_5, %c0_6] : memref<128x128xbf16, #tpu.memory_space<vmem>>, vector<128x128xbf16>
    %c0_7 = arith.constant 0 : index
    %c0_8 = arith.constant 0 : index
    %4 = vector.load %arg5[%c0_7, %c0_8] : memref<1x128xf32, #tpu.memory_space<vmem>>, vector<1x128xf32>
    %cst = arith.constant dense<0.000000e+00> : vector<128x128xf32>
    %5 = tpu.matmul %1, %2, %cst {dimension_numbers = #tpu.dot_dimension_numbers<[1], [0], [0], [1], [0, 0, 1, 1], [], []>} : vector<128x128xbf16>, vector<128x128xbf16>, vector<128x128xf32> -> vector<128x128xf32>
    %6 = arith.truncf %5 : vector<128x128xf32> to vector<128x128xbf16>
    %cst_9 = arith.constant dense<0.000000e+00> : vector<128x128xf32>
    %7 = tpu.matmul %1, %3, %cst_9 {dimension_numbers = #tpu.dot_dimension_numbers<[1], [0], [0], [1], [0, 0, 1, 1], [], []>} : vector<128x128xbf16>, vector<128x128xbf16>, vector<128x128xf32> -> vector<128x128xf32>
    %8 = vector.broadcast %4 : vector<1x128xf32> to vector<128x128xf32>
    %9 = arith.addf %7, %8 : vector<128x128xf32>
    %cst_10 = arith.constant dense<0.000000e+00> : vector<128x128xf32>
    %10 = tpu.matmul %0, %6, %cst_10 {dimension_numbers = #tpu.dot_dimension_numbers<[1], [0], [0], [1], [0, 0, 1, 1], [], []>} : vector<128x128xbf16>, vector<128x128xbf16>, vector<128x128xf32> -> vector<128x128xf32>
    %11 = arith.addf %10, %9 : vector<128x128xf32>
    %cst_11 = arith.constant 0.000000e+00 : f32
    %12 = vector.broadcast %cst_11 : f32 to vector<128x128xf32>
    %13 = arith.maximumf %11, %12 : vector<128x128xf32>
    %14 = arith.truncf %13 : vector<128x128xf32> to vector<128x128xbf16>
    %c0_12 = arith.constant 0 : index
    %c0_13 = arith.constant 0 : index
    %15 = vector.load %arg6[%c0_12, %c0_13] : memref<128x128xbf16, #tpu.memory_space<vmem>>, vector<128x128xbf16>
    %c0_14 = arith.constant 0 : index
    %c0_15 = arith.constant 0 : index
    %16 = vector.load %arg7[%c0_14, %c0_15] : memref<128x128xbf16, #tpu.memory_space<vmem>>, vector<128x128xbf16>
    %c0_16 = arith.constant 0 : index
    %c0_17 = arith.constant 0 : index
    %17 = vector.load %arg8[%c0_16, %c0_17] : memref<1x128xf32, #tpu.memory_space<vmem>>, vector<1x128xf32>
    %cst_18 = arith.constant dense<0.000000e+00> : vector<128x128xf32>
    %18 = tpu.matmul %14, %15, %cst_18 {dimension_numbers = #tpu.dot_dimension_numbers<[1], [0], [0], [1], [0, 0, 1, 1], [], []>} : vector<128x128xbf16>, vector<128x128xbf16>, vector<128x128xf32> -> vector<128x128xf32>
    %19 = arith.truncf %18 : vector<128x128xf32> to vector<128x128xbf16>
    %cst_19 = arith.constant dense<0.000000e+00> : vector<128x128xf32>
    %20 = tpu.matmul %14, %16, %cst_19 {dimension_numbers = #tpu.dot_dimension_numbers<[1], [0], [0], [1], [0, 0, 1, 1], [], []>} : vector<128x128xbf16>, vector<128x128xbf16>, vector<128x128xf32> -> vector<128x128xf32>
    %21 = vector.broadcast %17 : vector<1x128xf32> to vector<128x128xf32>
    %22 = arith.addf %20, %21 : vector<128x128xf32>
    %cst_20 = arith.constant dense<0.000000e+00> : vector<128x128xf32>
    %23 = tpu.matmul %0, %19, %cst_20 {dimension_numbers = #tpu.dot_dimension_numbers<[1], [0], [0], [1], [0, 0, 1, 1], [], []>} : vector<128x128xbf16>, vector<128x128xbf16>, vector<128x128xf32> -> vector<128x128xf32>
    %24 = arith.addf %23, %22 : vector<128x128xf32>
    %cst_21 = arith.constant 0.000000e+00 : f32
    %25 = vector.broadcast %cst_21 : f32 to vector<128x128xf32>
    %26 = arith.maximumf %24, %25 : vector<128x128xf32>
    %27 = arith.truncf %26 : vector<128x128xf32> to vector<128x128xbf16>
    %c0_22 = arith.constant 0 : index
    %c0_23 = arith.constant 0 : index
    %28 = vector.load %arg9[%c0_22, %c0_23] : memref<128x128xbf16, #tpu.memory_space<vmem>>, vector<128x128xbf16>
    %c0_24 = arith.constant 0 : index
    %c0_25 = arith.constant 0 : index
    %29 = vector.load %arg10[%c0_24, %c0_25] : memref<128x128xbf16, #tpu.memory_space<vmem>>, vector<128x128xbf16>
    %c0_26 = arith.constant 0 : index
    %c0_27 = arith.constant 0 : index
    %30 = vector.load %arg11[%c0_26, %c0_27] : memref<1x128xf32, #tpu.memory_space<vmem>>, vector<1x128xf32>
    %cst_28 = arith.constant dense<0.000000e+00> : vector<128x128xf32>
    %31 = tpu.matmul %27, %28, %cst_28 {dimension_numbers = #tpu.dot_dimension_numbers<[1], [0], [0], [1], [0, 0, 1, 1], [], []>} : vector<128x128xbf16>, vector<128x128xbf16>, vector<128x128xf32> -> vector<128x128xf32>
    %32 = arith.truncf %31 : vector<128x128xf32> to vector<128x128xbf16>
    %cst_29 = arith.constant dense<0.000000e+00> : vector<128x128xf32>
    %33 = tpu.matmul %27, %29, %cst_29 {dimension_numbers = #tpu.dot_dimension_numbers<[1], [0], [0], [1], [0, 0, 1, 1], [], []>} : vector<128x128xbf16>, vector<128x128xbf16>, vector<128x128xf32> -> vector<128x128xf32>
    %34 = vector.broadcast %30 : vector<1x128xf32> to vector<128x128xf32>
    %35 = arith.addf %33, %34 : vector<128x128xf32>
    %cst_30 = arith.constant dense<0.000000e+00> : vector<128x128xf32>
    %36 = tpu.matmul %0, %32, %cst_30 {dimension_numbers = #tpu.dot_dimension_numbers<[1], [0], [0], [1], [0, 0, 1, 1], [], []>} : vector<128x128xbf16>, vector<128x128xbf16>, vector<128x128xf32> -> vector<128x128xf32>
    %37 = arith.addf %36, %35 : vector<128x128xf32>
    %c0_31 = arith.constant 0 : index
    %c0_32 = arith.constant 0 : index
    %38 = vector.load %arg12[%c0_31, %c0_32] : memref<128x128xf32, #tpu.memory_space<vmem>>, vector<128x128xf32>
    tpu.vector_store %arg12[%c0_31, %c0_32], %37 {strides = array<i32>} : memref<128x128xf32, #tpu.memory_space<vmem>>, vector<128x128xf32>,
    return
  }
  func.func @transform_0(%arg0: i32) -> (i32, i32) {
    %c0_i32 = arith.constant 0 : i32
    %c0_i32_0 = arith.constant 0 : i32
    %c0_i32_1 = arith.constant 0 : i32
    return %c0_i32, %c0_i32_0 : i32, i32
  }
  func.func @transform_1(%arg0: i32) -> (i32, i32) {
    %c0_i32 = arith.constant 0 : i32
    %c0_i32_0 = arith.constant 0 : i32
    %c0_i32_1 = arith.constant 0 : i32
    return %c0_i32, %c0_i32_0 : i32, i32
  }
  func.func @transform_2(%arg0: i32) -> (i32, i32) {
    %c0_i32 = arith.constant 0 : i32
    %c0_i32_0 = arith.constant 0 : i32
    %c0_i32_1 = arith.constant 0 : i32
    return %c0_i32, %c0_i32_0 : i32, i32
  }
  func.func @transform_3(%arg0: i32) -> (i32, i32) {
    %c0_i32 = arith.constant 0 : i32
    %c0_i32_0 = arith.constant 0 : i32
    %c0_i32_1 = arith.constant 0 : i32
    return %c0_i32, %c0_i32_0 : i32, i32
  }
  func.func @transform_4(%arg0: i32) -> (i32, i32) {
    %c0_i32 = arith.constant 0 : i32
    %c0_i32_0 = arith.constant 0 : i32
    %c0_i32_1 = arith.constant 0 : i32
    return %c0_i32, %c0_i32_0 : i32, i32
  }
  func.func @transform_5(%arg0: i32) -> (i32, i32) {
    %c0_i32 = arith.constant 0 : i32
    %c0_i32_0 = arith.constant 0 : i32
    %c0_i32_1 = arith.constant 0 : i32
    return %c0_i32, %c0_i32_0 : i32, i32
  }
  func.func @transform_6(%arg0: i32) -> (i32, i32) {
    %c0_i32 = arith.constant 0 : i32
    %c0_i32_0 = arith.constant 0 : i32
    %c0_i32_1 = arith.constant 0 : i32
    return %c0_i32, %c0_i32_0 : i32, i32
  }
  func.func @transform_7(%arg0: i32) -> (i32, i32) {
    %c0_i32 = arith.constant 0 : i32
    %c0_i32_0 = arith.constant 0 : i32
    %c0_i32_1 = arith.constant 0 : i32
    return %c0_i32, %c0_i32_0 : i32, i32
  }
  func.func @transform_8(%arg0: i32) -> (i32, i32) {
    %c0_i32 = arith.constant 0 : i32
    %c0_i32_0 = arith.constant 0 : i32
    %c0_i32_1 = arith.constant 0 : i32
    return %c0_i32, %c0_i32_0 : i32, i32
  }
  func.func @transform_9(%arg0: i32) -> (i32, i32) {
    %c0_i32 = arith.constant 0 : i32
    %c0_i32_0 = arith.constant 0 : i32
    %c0_i32_1 = arith.constant 0 : i32
    return %c0_i32, %c0_i32_0 : i32, i32
  }
  func.func @transform_10(%arg0: i32) -> (i32, i32) {
    %c0_i32 = arith.constant 0 : i32
    %c0_i32_0 = arith.constant 0 : i32
    %c0_i32_1 = arith.constant 0 : i32
    return %c0_i32, %c0_i32_0 : i32, i32
  }
  func.func @transform_11(%arg0: i32) -> (i32, i32) {
    %c0_i32 = arith.constant 0 : i32
    %c0_i32_0 = arith.constant 0 : i32
    %c0_i32_1 = arith.constant 0 : i32
    return %c0_i32, %c0_i32_0 : i32, i32
  }
}

</mosaic_0001>

<llo_original>
// kernel: sage_forward.1
$region0: #{sage_forward.1}
  #allocation0 [shape = 'u32[]', space=smem, size = 0x4, offset = 0x4, fixed_abs, tag = 'smem constant byte address 0x4 - core index']
  #allocation1 [shape = 'u32[72,128]{1,0:T(1,128)}', space=vmem, size = 0x9000, scoped, tag = 'internal scratch']
  %s0 = inlined_call_operand.vmem [shape: bf16[128,128], index: 0, kind: input, shape index: {}]
  %s1 = inlined_call_operand.vmem [shape: bf16[128,128], index: 1, kind: input, shape index: {}]
  %s2 = inlined_call_operand.vmem [shape: bf16[128,128], index: 2, kind: input, shape index: {}]
  %s3 = inlined_call_operand.vmem [shape: bf16[128,128], index: 3, kind: input, shape index: {}]
  %s4 = inlined_call_operand.vmem [shape: f32[1,128], index: 4, kind: input, shape index: {}]
  %s5 = inlined_call_operand.vmem [shape: bf16[128,128], index: 5, kind: input, shape index: {}]
  %s6 = inlined_call_operand.vmem [shape: bf16[128,128], index: 6, kind: input, shape index: {}]
  %s7 = inlined_call_operand.vmem [shape: f32[1,128], index: 7, kind: input, shape index: {}]
  %s8 = inlined_call_operand.vmem [shape: bf16[128,128], index: 8, kind: input, shape index: {}]
  %s9 = inlined_call_operand.vmem [shape: bf16[128,128], index: 9, kind: input, shape index: {}]
  %s10 = inlined_call_operand.vmem [shape: f32[1,128], index: 10, kind: input, shape index: {}]
  %s11 = inlined_call_operand.vmem [shape: f32[128,128], index: 11, kind: output, shape index: {}]
  %s12 = sld [smem:[#allocation0]]
  $region54: #{sage_forward.1} parent=0
    _
  %s14 = ssub.s32 1, %s12
  %s15 = scalar_select 0, %s14, %s12
  // Predicated region
  $region2: #{sage_forward.1} parent=0 // pred_check
    _
  $region3: #{sage_forward.1} parent=0 // pred_check_branch
    %17 = sbr.rel (0) target = $region5
  $region4: #{sage_forward.1} parent=0 // pred_region
    _
  $region5: #{sage_forward.1} parent=0 // pred_fallthru
    _
  // Predicated region
  $region6: #{sage_forward.1} parent=0 // pred_check
    _
  $region7: #{sage_forward.1} parent=0 // pred_check_branch
    %19 = sbr.rel (0) target = $region9
  $region8: #{sage_forward.1} parent=0 // pred_region
    _
  $region9: #{sage_forward.1} parent=0 // pred_fallthru
    _
  // Predicated region
  $region10: #{sage_forward.1} parent=0 // pred_check
    _
  $region11: #{sage_forward.1} parent=0 // pred_check_branch
    %21 = sbr.rel (0) target = $region13
  $region12: #{sage_forward.1} parent=0 // pred_region
    _
  $region13: #{sage_forward.1} parent=0 // pred_fallthru
    _
  // Predicated region
  $region14: #{sage_forward.1} parent=0 // pred_check
    _
  $region15: #{sage_forward.1} parent=0 // pred_check_branch
    %23 = sbr.rel (0) target = $region17
  $region16: #{sage_forward.1} parent=0 // pred_region
    _
  $region17: #{sage_forward.1} parent=0 // pred_fallthru
    _
  // Predicated region
  $region18: #{sage_forward.1} parent=0 // pred_check
    _
  $region19: #{sage_forward.1} parent=0 // pred_check_branch
    %25 = sbr.rel (0) target = $region21
  $region20: #{sage_forward.1} parent=0 // pred_region
    _
  $region21: #{sage_forward.1} parent=0 // pred_fallthru
    _
  // Predicated region
  $region22: #{sage_forward.1} parent=0 // pred_check
    _
  $region23: #{sage_forward.1} parent=0 // pred_check_branch
    %27 = sbr.rel (0) target = $region25
  $region24: #{sage_forward.1} parent=0 // pred_region
    _
  $region25: #{sage_forward.1} parent=0 // pred_fallthru
    _
  // Predicated region
  $region26: #{sage_forward.1} parent=0 // pred_check
    _
  $region27: #{sage_forward.1} parent=0 // pred_check_branch
    %29 = sbr.rel (0) target = $region29
  $region28: #{sage_forward.1} parent=0 // pred_region
    _
  $region29: #{sage_forward.1} parent=0 // pred_fallthru
    _
  // Predicated region
  $region30: #{sage_forward.1} parent=0 // pred_check
    _
  $region31: #{sage_forward.1} parent=0 // pred_check_branch
    %31 = sbr.rel (0) target = $region33
  $region32: #{sage_forward.1} parent=0 // pred_region
    _
  $region33: #{sage_forward.1} parent=0 // pred_fallthru
    _
  // Predicated region
  $region34: #{sage_forward.1} parent=0 // pred_check
    _
  $region35: #{sage_forward.1} parent=0 // pred_check_branch
    %33 = sbr.rel (0) target = $region37
  $region36: #{sage_forward.1} parent=0 // pred_region
    _
  $region37: #{sage_forward.1} parent=0 // pred_fallthru
    _
  // Predicated region
  $region38: #{sage_forward.1} parent=0 // pred_check
    _
  $region39: #{sage_forward.1} parent=0 // pred_check_branch
    %35 = sbr.rel (0) target = $region41
  $region40: #{sage_forward.1} parent=0 // pred_region
    _
  $region41: #{sage_forward.1} parent=0 // pred_fallthru
    _
  // Predicated region
  $region42: #{sage_forward.1} parent=0 // pred_check
    _
  $region43: #{sage_forward.1} parent=0 // pred_check_branch
    %37 = sbr.rel (0) target = $region45
  $region44: #{sage_forward.1} parent=0 // pred_region
    _
  $region45: #{sage_forward.1} parent=0 // pred_fallthru
    _
  %v38 = vld [vmem:[%s0] sm:$0xf]
  %v39 = vld [vmem:[%s0 + $0x4] sm:$0xf]
  %v40 = vld [vmem:[%s0 + $0x8] sm:$0xf]
  %v41 = vld [vmem:[%s0 + $0xc] sm:$0xf]
  %v42 = vld [vmem:[%s0 + $0x10] sm:$0xf]
  %v43 = vld [vmem:[%s0 + $0x14] sm:$0xf]
  %v44 = vld [vmem:[%s0 + $0x18] sm:$0xf]
  %v45 = vld [vmem:[%s0 + $0x1c] sm:$0xf]
  %v46 = vld [vmem:[%s0 + $0x20] sm:$0xf]
  %v47 = vld [vmem:[%s0 + $0x24] sm:$0xf]
  %v48 = vld [vmem:[%s0 + $0x28] sm:$0xf]
  %v49 = vld [vmem:[%s0 + $0x2c] sm:$0xf]
  %v50 = vld [vmem:[%s0 + $0x30] sm:$0xf]
  %v51 = vld [vmem:[%s0 + $0x34] sm:$0xf]
  %v52 = vld [vmem:[%s0 + $0x38] sm:$0xf]
  %v53 = vld [vmem:[%s0 + $0x3c] sm:$0xf]
  %v54 = vld [vmem:[%s1] sm:$0xf]
  %v55 = vld [vmem:[%s1 + $0x4] sm:$0xf]
  %v56 = vld [vmem:[%s1 + $0x8] sm:$0xf]
  %v57 = vld [vmem:[%s1 + $0xc] sm:$0xf]
  %v58 = vld [vmem:[%s1 + $0x10] sm:$0xf]
  %v59 = vld [vmem:[%s1 + $0x14] sm:$0xf]
  %v60 = vld [vmem:[%s1 + $0x18] sm:$0xf]
  %v61 = vld [vmem:[%s1 + $0x1c] sm:$0xf]
  %v62 = vld [vmem:[%s1 + $0x20] sm:$0xf]
  %v63 = vld [vmem:[%s1 + $0x24] sm:$0xf]
  %v64 = vld [vmem:[%s1 + $0x28] sm:$0xf]
  %v65 = vld [vmem:[%s1 + $0x2c] sm:$0xf]
  %v66 = vld [vmem:[%s1 + $0x30] sm:$0xf]
  %v67 = vld [vmem:[%s1 + $0x34] sm:$0xf]
  %v68 = vld [vmem:[%s1 + $0x38] sm:$0xf]
  %v69 = vld [vmem:[%s1 + $0x3c] sm:$0xf]
  %v70 = vld [vmem:[%s2] sm:$0xf]
  %v71 = vld [vmem:[%s2 + $0x4] sm:$0xf]
  %v72 = vld [vmem:[%s2 + $0x8] sm:$0xf]
  %v73 = vld [vmem:[%s2 + $0xc] sm:$0xf]
  %v74 = vld [vmem:[%s2 + $0x10] sm:$0xf]
  %v75 = vld [vmem:[%s2 + $0x14] sm:$0xf]
  %v76 = vld [vmem:[%s2 + $0x18] sm:$0xf]
  %v77 = vld [vmem:[%s2 + $0x1c] sm:$0xf]
  %v78 = vld [vmem:[%s2 + $0x20] sm:$0xf]
  %v79 = vld [vmem:[%s2 + $0x24] sm:$0xf]
  %v80 = vld [vmem:[%s2 + $0x28] sm:$0xf]
  %v81 = vld [vmem:[%s2 + $0x2c] sm:$0xf]
  %v82 = vld [vmem:[%s2 + $0x30] sm:$0xf]
  %v83 = vld [vmem:[%s2 + $0x34] sm:$0xf]
  %v84 = vld [vmem:[%s2 + $0x38] sm:$0xf]
  %v85 = vld [vmem:[%s2 + $0x3c] sm:$0xf]
  %v86 = vld [vmem:[%s3] sm:$0xf]
  %v87 = vld [vmem:[%s3 + $0x4] sm:$0xf]
  %v88 = vld [vmem:[%s3 + $0x8] sm:$0xf]
  %v89 = vld [vmem:[%s3 + $0xc] sm:$0xf]
  %v90 = vld [vmem:[%s3 + $0x10] sm:$0xf]
  %v91 = vld [vmem:[%s3 + $0x14] sm:$0xf]
  %v92 = vld [vmem:[%s3 + $0x18] sm:$0xf]
  %v93 = vld [vmem:[%s3 + $0x1c] sm:$0xf]
  %v94 = vld [vmem:[%s3 + $0x20] sm:$0xf]
  %v95 = vld [vmem:[%s3 + $0x24] sm:$0xf]
  %v96 = vld [vmem:[%s3 + $0x28] sm:$0xf]
  %v97 = vld [vmem:[%s3 + $0x2c] sm:$0xf]
  %v98 = vld [vmem:[%s3 + $0x30] sm:$0xf]
  %v99 = vld [vmem:[%s3 + $0x34] sm:$0xf]
  %v100 = vld [vmem:[%s3 + $0x38] sm:$0xf]
  %v101 = vld [vmem:[%s3 + $0x3c] sm:$0xf]
  %v102 = vld [vmem:[%s4] sm:$0x1]
  %v119 = vunpack.c.l.b16 %v54
  %v120 = vunpack.c.l.b16 %v55
  %v121 = vunpack.c.l.b16 %v56
  %v122 = vunpack.c.l.b16 %v57
  %v123 = vunpack.c.l.b16 %v58
  %v124 = vunpack.c.l.b16 %v59
  %v125 = vunpack.c.l.b16 %v60
  %v126 = vunpack.c.l.b16 %v61
  %v127 = vunpack.c.l.b16 %v62
  %v128 = vunpack.c.l.b16 %v63
  %v129 = vunpack.c.l.b16 %v64
  %v130 = vunpack.c.l.b16 %v65
  %v131 = vunpack.c.l.b16 %v66
  %v132 = vunpack.c.l.b16 %v67
  %v133 = vunpack.c.l.b16 %v68
  %v134 = vunpack.c.l.b16 %v69
  %v135 = vpack.c.b16 %v120, %v119
  %v136 = vpack.c.b16 %v122, %v121
  %v137 = vpack.c.b16 %v124, %v123
  %v138 = vpack.c.b16 %v126, %v125
  %v139 = vpack.c.b16 %v128, %v127
  %v140 = vpack.c.b16 %v130, %v129
  %v141 = vpack.c.b16 %v132, %v131
  %v142 = vpack.c.b16 %v134, %v133
  %v167 = vunpack.c.l.b16 %v70
  %v168 = vunpack.c.l.b16 %v71
  %v169 = vunpack.c.l.b16 %v72
  %v170 = vunpack.c.l.b16 %v73
  %v171 = vunpack.c.l.b16 %v74
  %v172 = vunpack.c.l.b16 %v75
  %v173 = vunpack.c.l.b16 %v76
  %v174 = vunpack.c.l.b16 %v77
  %v175 = vunpack.c.l.b16 %v78
  %v176 = vunpack.c.l.b16 %v79
  %v177 = vunpack.c.l.b16 %v80
  %v178 = vunpack.c.l.b16 %v81
  %v179 = vunpack.c.l.b16 %v82
  %v180 = vunpack.c.l.b16 %v83
  %v181 = vunpack.c.l.b16 %v84
  %v182 = vunpack.c.l.b16 %v85
  %v183 = vpack.c.b16 %v168, %v167
  %v184 = vpack.c.b16 %v170, %v169
  %v185 = vpack.c.b16 %v172, %v171
  %v186 = vpack.c.b16 %v174, %v173
  %v187 = vpack.c.b16 %v176, %v175
  %v188 = vpack.c.b16 %v178, %v177
  %v189 = vpack.c.b16 %v180, %v179
  %v190 = vpack.c.b16 %v182, %v181
  %199 = vmatpush.bf16.msra.mxu0 %v190
  %200 = vmatpush.bf16.msra.mxu0 %v189
  %201 = vmatpush.bf16.msra.mxu0 %v188
  %202 = vmatpush.bf16.msra.mxu0 %v187
  %203 = vmatpush.bf16.msra.mxu0 %v186
  %204 = vmatpush.bf16.msra.mxu0 %v185
  %205 = vmatpush.bf16.msra.mxu0 %v184
  %206 = vmatpush.bf16.msra.mxu0 %v183
  %207 = vmatmul.bf16.gmra.mxu0 %v135
  %v208 = vpop.f32.mrf.mxu0
  %v209 = vadd.f32 0.0, %v208
  %v210 = vpop.f32.mrf.mxu0
  %v211 = vadd.f32 0.0, %v210
  %212 = vmatmul.bf16.gmra.mxu0 %v136
  %v213 = vpop.f32.mrf.mxu0
  %v214 = vadd.f32 0.0, %v213
  %v215 = vpop.f32.mrf.mxu0
  %v216 = vadd.f32 0.0, %v215
  %217 = vmatmul.bf16.gmra.mxu0 %v137
  %v218 = vpop.f32.mrf.mxu0
  %v219 = vadd.f32 0.0, %v218
  %v220 = vpop.f32.mrf.mxu0
  %v221 = vadd.f32 0.0, %v220
  %222 = vmatmul.bf16.gmra.mxu0 %v138
  %v223 = vpop.f32.mrf.mxu0
  %v224 = vadd.f32 0.0, %v223
  %v225 = vpop.f32.mrf.mxu0
  %v226 = vadd.f32 0.0, %v225
  %227 = vmatmul.bf16.gmra.mxu0 %v139
  %v228 = vpop.f32.mrf.mxu0
  %v229 = vadd.f32 0.0, %v228
  %v230 = vpop.f32.mrf.mxu0
  %v231 = vadd.f32 0.0, %v230
  %232 = vmatmul.bf16.gmra.mxu0 %v140
  %v233 = vpop.f32.mrf.mxu0
  %v234 = vadd.f32 0.0, %v233
  %v235 = vpop.f32.mrf.mxu0
  %v236 = vadd.f32 0.0, %v235
  %237 = vmatmul.bf16.gmra.mxu0 %v141
  %v238 = vpop.f32.mrf.mxu0
  %v239 = vadd.f32 0.0, %v238
  %v240 = vpop.f32.mrf.mxu0
  %v241 = vadd.f32 0.0, %v240
  %242 = vmatmul.bf16.gmra.mxu0 %v142
  %v243 = vpop.f32.mrf.mxu0
  %v244 = vadd.f32 0.0, %v243
  %v245 = vpop.f32.mrf.mxu0
  %v246 = vadd.f32 0.0, %v245
  %247 = vdwg.mxu0
  %v248 = vpack.c.bf16 %v211, %v209
  %v249 = vpack.c.bf16 %v216, %v214
  %v250 = vpack.c.bf16 %v221, %v219
  %v251 = vpack.c.bf16 %v226, %v224
  %v252 = vpack.c.bf16 %v231, %v229
  %v253 = vpack.c.bf16 %v236, %v234
  %v254 = vpack.c.bf16 %v241, %v239
  %v255 = vpack.c.bf16 %v246, %v244
  %v257 = vperm.slane %v102, 0
  %v275 = vunpack.c.l.b16 %v86
  %v276 = vunpack.c.l.b16 %v87
  %v277 = vunpack.c.l.b16 %v88
  %v278 = vunpack.c.l.b16 %v89
  %v279 = vunpack.c.l.b16 %v90
  %v280 = vunpack.c.l.b16 %v91
  %v281 = vunpack.c.l.b16 %v92
  %v282 = vunpack.c.l.b16 %v93
  %v283 = vunpack.c.l.b16 %v94
  %v284 = vunpack.c.l.b16 %v95
  %v285 = vunpack.c.l.b16 %v96
  %v286 = vunpack.c.l.b16 %v97
  %v287 = vunpack.c.l.b16 %v98
  %v288 = vunpack.c.l.b16 %v99
  %v289 = vunpack.c.l.b16 %v100
  %v290 = vunpack.c.l.b16 %v101
  %v291 = vpack.c.b16 %v276, %v275
  %v292 = vpack.c.b16 %v278, %v277
  %v293 = vpack.c.b16 %v280, %v279
  %v294 = vpack.c.b16 %v282, %v281
  %v295 = vpack.c.b16 %v284, %v283
  %v296 = vpack.c.b16 %v286, %v285
  %v297 = vpack.c.b16 %v288, %v287
  %v298 = vpack.c.b16 %v290, %v289
  %307 = vmatpush.bf16.msra.mxu0 %v298
  %308 = vmatpush.bf16.msra.mxu0 %v297
  %309 = vmatpush.bf16.msra.mxu0 %v296
  %310 = vmatpush.bf16.msra.mxu0 %v295
  %311 = vmatpush.bf16.msra.mxu0 %v294
  %312 = vmatpush.bf16.msra.mxu0 %v293
  %313 = vmatpush.bf16.msra.mxu0 %v292
  %314 = vmatpush.bf16.msra.mxu0 %v291
  %315 = vmatmul.bf16.gmra.mxu0 %v135
  %v316 = vpop.f32.mrf.mxu0
  %v317 = vadd.f32 %v257, %v316
  %v318 = vpop.f32.mrf.mxu0
  %v319 = vadd.f32 %v257, %v318
  %320 = vmatmul.bf16.gmra.mxu0 %v136
  %v321 = vpop.f32.mrf.mxu0
  %v322 = vadd.f32 %v257, %v321
  %v323 = vpop.f32.mrf.mxu0
  %v324 = vadd.f32 %v257, %v323
  %325 = vmatmul.bf16.gmra.mxu0 %v137
  %v326 = vpop.f32.mrf.mxu0
  %v327 = vadd.f32 %v257, %v326
  %v328 = vpop.f32.mrf.mxu0
  %v329 = vadd.f32 %v257, %v328
  %330 = vmatmul.bf16.gmra.mxu0 %v138
  %v331 = vpop.f32.mrf.mxu0
  %v332 = vadd.f32 %v257, %v331
  %v333 = vpop.f32.mrf.mxu0
  %v334 = vadd.f32 %v257, %v333
  %335 = vmatmul.bf16.gmra.mxu0 %v139
  %v336 = vpop.f32.mrf.mxu0
  %v337 = vadd.f32 %v257, %v336
  %v338 = vpop.f32.mrf.mxu0
  %v339 = vadd.f32 %v257, %v338
  %340 = vmatmul.bf16.gmra.mxu0 %v140
  %v341 = vpop.f32.mrf.mxu0
  %v342 = vadd.f32 %v257, %v341
  %v343 = vpop.f32.mrf.mxu0
  %v344 = vadd.f32 %v257, %v343
  %345 = vmatmul.bf16.gmra.mxu0 %v141
  %v346 = vpop.f32.mrf.mxu0
  %v347 = vadd.f32 %v257, %v346
  %v348 = vpop.f32.mrf.mxu0
  %v349 = vadd.f32 %v257, %v348
  %350 = vmatmul.bf16.gmra.mxu0 %v142
  %v351 = vpop.f32.mrf.mxu0
  %v352 = vadd.f32 %v257, %v351
  %v353 = vpop.f32.mrf.mxu0
  %v354 = vadd.f32 %v257, %v353
  %355 = vdwg.mxu0
  %v372 = vunpack.c.l.b16 %v38
  %v373 = vunpack.c.l.b16 %v39
  %v374 = vunpack.c.l.b16 %v40
  %v375 = vunpack.c.l.b16 %v41
  %v376 = vunpack.c.l.b16 %v42
  %v377 = vunpack.c.l.b16 %v43
  %v378 = vunpack.c.l.b16 %v44
  %v379 = vunpack.c.l.b16 %v45
  %v380 = vunpack.c.l.b16 %v46
  %v381 = vunpack.c.l.b16 %v47
  %v382 = vunpack.c.l.b16 %v48
  %v383 = vunpack.c.l.b16 %v49
  %v384 = vunpack.c.l.b16 %v50
  %v385 = vunpack.c.l.b16 %v51
  %v386 = vunpack.c.l.b16 %v52
  %v387 = vunpack.c.l.b16 %v53
  %v388 = vpack.c.b16 %v373, %v372
  %v389 = vpack.c.b16 %v375, %v374
  %v390 = vpack.c.b16 %v377, %v376
  %v391 = vpack.c.b16 %v379, %v378
  %v392 = vpack.c.b16 %v381, %v380
  %v393 = vpack.c.b16 %v383, %v382
  %v394 = vpack.c.b16 %v385, %v384
  %v395 = vpack.c.b16 %v387, %v386
  %404 = vmatpush.bf16.msra.mxu0 %v255
  %405 = vmatpush.bf16.msra.mxu0 %v254
  %406 = vmatpush.bf16.msra.mxu0 %v253
  %407 = vmatpush.bf16.msra.mxu0 %v252
  %408 = vmatpush.bf16.msra.mxu0 %v251
  %409 = vmatpush.bf16.msra.mxu0 %v250
  %410 = vmatpush.bf16.msra.mxu0 %v249
  %411 = vmatpush.bf16.msra.mxu0 %v248
  %412 = vmatmul.bf16.gmra.mxu0 %v388
  %v413 = vpop.f32.mrf.mxu0
  %v414 = vadd.f32 %v317, %v413
  %v415 = vpop.f32.mrf.mxu0
  %v416 = vadd.f32 %v319, %v415
  %417 = vmatmul.bf16.gmra.mxu0 %v389
  %v418 = vpop.f32.mrf.mxu0
  %v419 = vadd.f32 %v322, %v418
  %v420 = vpop.f32.mrf.mxu0
  %v421 = vadd.f32 %v324, %v420
  %422 = vmatmul.bf16.gmra.mxu0 %v390
  %v423 = vpop.f32.mrf.mxu0
  %v424 = vadd.f32 %v327, %v423
  %v425 = vpop.f32.mrf.mxu0
  %v426 = vadd.f32 %v329, %v425
  %427 = vmatmul.bf16.gmra.mxu0 %v391
  %v428 = vpop.f32.mrf.mxu0
  %v429 = vadd.f32 %v332, %v428
  %v430 = vpop.f32.mrf.mxu0
  %v431 = vadd.f32 %v334, %v430
  %432 = vmatmul.bf16.gmra.mxu0 %v392
  %v433 = vpop.f32.mrf.mxu0
  %v434 = vadd.f32 %v337, %v433
  %v435 = vpop.f32.mrf.mxu0
  %v436 = vadd.f32 %v339, %v435
  %437 = vmatmul.bf16.gmra.mxu0 %v393
  %v438 = vpop.f32.mrf.mxu0
  %v439 = vadd.f32 %v342, %v438
  %v440 = vpop.f32.mrf.mxu0
  %v441 = vadd.f32 %v344, %v440
  %442 = vmatmul.bf16.gmra.mxu0 %v394
  %v443 = vpop.f32.mrf.mxu0
  %v444 = vadd.f32 %v347, %v443
  %v445 = vpop.f32.mrf.mxu0
  %v446 = vadd.f32 %v349, %v445
  %447 = vmatmul.bf16.gmra.mxu0 %v395
  %v448 = vpop.f32.mrf.mxu0
  %v449 = vadd.f32 %v352, %v448
  %v450 = vpop.f32.mrf.mxu0
  %v451 = vadd.f32 %v354, %v450
  %452 = vdwg.mxu0
  %v453 = vmax.f32 %v414, 0.0
  %v454 = vmax.f32 %v416, 0.0
  %v455 = vmax.f32 %v419, 0.0
  %v456 = vmax.f32 %v421, 0.0
  %v457 = vmax.f32 %v424, 0.0
  %v458 = vmax.f32 %v426, 0.0
  %v459 = vmax.f32 %v429, 0.0
  %v460 = vmax.f32 %v431, 0.0
  %v461 = vmax.f32 %v434, 0.0
  %v462 = vmax.f32 %v436, 0.0
  %v463 = vmax.f32 %v439, 0.0
  %v464 = vmax.f32 %v441, 0.0
  %v465 = vmax.f32 %v444, 0.0
  %v466 = vmax.f32 %v446, 0.0
  %v467 = vmax.f32 %v449, 0.0
  %v468 = vmax.f32 %v451, 0.0
  %v469 = vpack.c.bf16 %v454, %v453
  %v470 = vpack.c.bf16 %v456, %v455
  %v471 = vpack.c.bf16 %v458, %v457
  %v472 = vpack.c.bf16 %v460, %v459
  %v473 = vpack.c.bf16 %v462, %v461
  %v474 = vpack.c.bf16 %v464, %v463
  %v475 = vpack.c.bf16 %v466, %v465
  %v476 = vpack.c.bf16 %v468, %v467
  %v477 = vld [vmem:[%s5] sm:$0xf]
  %v478 = vld [vmem:[%s5 + $0x4] sm:$0xf]
  %v479 = vld [vmem:[%s5 + $0x8] sm:$0xf]
  %v480 = vld [vmem:[%s5 + $0xc] sm:$0xf]
  %v481 = vld [vmem:[%s5 + $0x10] sm:$0xf]
  %v482 = vld [vmem:[%s5 + $0x14] sm:$0xf]
  %v483 = vld [vmem:[%s5 + $0x18] sm:$0xf]
  %v484 = vld [vmem:[%s5 + $0x1c] sm:$0xf]
  %v485 = vld [vmem:[%s5 + $0x20] sm:$0xf]
  %v486 = vld [vmem:[%s5 + $0x24] sm:$0xf]
  %v487 = vld [vmem:[%s5 + $0x28] sm:$0xf]
  %v488 = vld [vmem:[%s5 + $0x2c] sm:$0xf]
  %v489 = vld [vmem:[%s5 + $0x30] sm:$0xf]
  %v490 = vld [vmem:[%s5 + $0x34] sm:$0xf]
  %v491 = vld [vmem:[%s5 + $0x38] sm:$0xf]
  %v492 = vld [vmem:[%s5 + $0x3c] sm:$0xf]
  %v493 = vld [vmem:[%s6] sm:$0xf]
  %v494 = vld [vmem:[%s6 + $0x4] sm:$0xf]
  %v495 = vld [vmem:[%s6 + $0x8] sm:$0xf]
  %v496 = vld [vmem:[%s6 + $0xc] sm:$0xf]
  %v497 = vld [vmem:[%s6 + $0x10] sm:$0xf]
  %v498 = vld [vmem:[%s6 + $0x14] sm:$0xf]
  %v499 = vld [vmem:[%s6 + $0x18] sm:$0xf]
  %v500 = vld [vmem:[%s6 + $0x1c] sm:$0xf]
  %v501 = vld [vmem:[%s6 + $0x20] sm:$0xf]
  %v502 = vld [vmem:[%s6 + $0x24] sm:$0xf]
  %v503 = vld [vmem:[%s6 + $0x28] sm:$0xf]
  %v504 = vld [vmem:[%s6 + $0x2c] sm:$0xf]
  %v505 = vld [vmem:[%s6 + $0x30] sm:$0xf]
  %v506 = vld [vmem:[%s6 + $0x34] sm:$0xf]
  %v507 = vld [vmem:[%s6 + $0x38] sm:$0xf]
  %v508 = vld [vmem:[%s6 + $0x3c] sm:$0xf]
  %v509 = vld [vmem:[%s7] sm:$0x1]
  %v526 = vunpack.c.l.b16 %v477
  %v527 = vunpack.c.l.b16 %v478
  %v528 = vunpack.c.l.b16 %v479
  %v529 = vunpack.c.l.b16 %v480
  %v530 = vunpack.c.l.b16 %v481
  %v531 = vunpack.c.l.b16 %v482
  %v532 = vunpack.c.l.b16 %v483
  %v533 = vunpack.c.l.b16 %v484
  %v534 = vunpack.c.l.b16 %v485
  %v535 = vunpack.c.l.b16 %v486
  %v536 = vunpack.c.l.b16 %v487
  %v537 = vunpack.c.l.b16 %v488
  %v538 = vunpack.c.l.b16 %v489
  %v539 = vunpack.c.l.b16 %v490
  %v540 = vunpack.c.l.b16 %v491
  %v541 = vunpack.c.l.b16 %v492
  %v542 = vpack.c.b16 %v527, %v526
  %v543 = vpack.c.b16 %v529, %v528
  %v544 = vpack.c.b16 %v531, %v530
  %v545 = vpack.c.b16 %v533, %v532
  %v546 = vpack.c.b16 %v535, %v534
  %v547 = vpack.c.b16 %v537, %v536
  %v548 = vpack.c.b16 %v539, %v538
  %v549 = vpack.c.b16 %v541, %v540
  %558 = vmatpush.bf16.msra.mxu0 %v549
  %559 = vmatpush.bf16.msra.mxu0 %v548
  %560 = vmatpush.bf16.msra.mxu0 %v547
  %561 = vmatpush.bf16.msra.mxu0 %v546
  %562 = vmatpush.bf16.msra.mxu0 %v545
  %563 = vmatpush.bf16.msra.mxu0 %v544
  %564 = vmatpush.bf16.msra.mxu0 %v543
  %565 = vmatpush.bf16.msra.mxu0 %v542
  %566 = vmatmul.bf16.gmra.mxu0 %v469
  %v567 = vpop.f32.mrf.mxu0
  %v568 = vadd.f32 0.0, %v567
  %v569 = vpop.f32.mrf.mxu0
  %v570 = vadd.f32 0.0, %v569
  %571 = vmatmul.bf16.gmra.mxu0 %v470
  %v572 = vpop.f32.mrf.mxu0
  %v573 = vadd.f32 0.0, %v572
  %v574 = vpop.f32.mrf.mxu0
  %v575 = vadd.f32 0.0, %v574
  %576 = vmatmul.bf16.gmra.mxu0 %v471
  %v577 = vpop.f32.mrf.mxu0
  %v578 = vadd.f32 0.0, %v577
  %v579 = vpop.f32.mrf.mxu0
  %v580 = vadd.f32 0.0, %v579
  %581 = vmatmul.bf16.gmra.mxu0 %v472
  %v582 = vpop.f32.mrf.mxu0
  %v583 = vadd.f32 0.0, %v582
  %v584 = vpop.f32.mrf.mxu0
  %v585 = vadd.f32 0.0, %v584
  %586 = vmatmul.bf16.gmra.mxu0 %v473
  %v587 = vpop.f32.mrf.mxu0
  %v588 = vadd.f32 0.0, %v587
  %v589 = vpop.f32.mrf.mxu0
  %v590 = vadd.f32 0.0, %v589
  %591 = vmatmul.bf16.gmra.mxu0 %v474
  %v592 = vpop.f32.mrf.mxu0
  %v593 = vadd.f32 0.0, %v592
  %v594 = vpop.f32.mrf.mxu0
  %v595 = vadd.f32 0.0, %v594
  %596 = vmatmul.bf16.gmra.mxu0 %v475
  %v597 = vpop.f32.mrf.mxu0
  %v598 = vadd.f32 0.0, %v597
  %v599 = vpop.f32.mrf.mxu0
  %v600 = vadd.f32 0.0, %v599
  %601 = vmatmul.bf16.gmra.mxu0 %v476
  %v602 = vpop.f32.mrf.mxu0
  %v603 = vadd.f32 0.0, %v602
  %v604 = vpop.f32.mrf.mxu0
  %v605 = vadd.f32 0.0, %v604
  %606 = vdwg.mxu0
  %v607 = vpack.c.bf16 %v570, %v568
  %v608 = vpack.c.bf16 %v575, %v573
  %v609 = vpack.c.bf16 %v580, %v578
  %v610 = vpack.c.bf16 %v585, %v583
  %v611 = vpack.c.bf16 %v590, %v588
  %v612 = vpack.c.bf16 %v595, %v593
  %v613 = vpack.c.bf16 %v600, %v598
  %v614 = vpack.c.bf16 %v605, %v603
  %v616 = vperm.slane %v509, 0
  %v634 = vunpack.c.l.b16 %v493
  %v635 = vunpack.c.l.b16 %v494
  %v636 = vunpack.c.l.b16 %v495
  %v637 = vunpack.c.l.b16 %v496
  %v638 = vunpack.c.l.b16 %v497
  %v639 = vunpack.c.l.b16 %v498
  %v640 = vunpack.c.l.b16 %v499
  %v641 = vunpack.c.l.b16 %v500
  %v642 = vunpack.c.l.b16 %v501
  %v643 = vunpack.c.l.b16 %v502
  %v644 = vunpack.c.l.b16 %v503
  %v645 = vunpack.c.l.b16 %v504
  %v646 = vunpack.c.l.b16 %v505
  %v647 = vunpack.c.l.b16 %v506
  %v648 = vunpack.c.l.b16 %v507
  %v649 = vunpack.c.l.b16 %v508
  %v650 = vpack.c.b16 %v635, %v634
  %v651 = vpack.c.b16 %v637, %v636
  %v652 = vpack.c.b16 %v639, %v638
  %v653 = vpack.c.b16 %v641, %v640
  %v654 = vpack.c.b16 %v643, %v642
  %v655 = vpack.c.b16 %v645, %v644
  %v656 = vpack.c.b16 %v647, %v646
  %v657 = vpack.c.b16 %v649, %v648
  %666 = vmatpush.bf16.msra.mxu0 %v657
  %667 = vmatpush.bf16.msra.mxu0 %v656
  %668 = vmatpush.bf16.msra.mxu0 %v655
  %669 = vmatpush.bf16.msra.mxu0 %v654
  %670 = vmatpush.bf16.msra.mxu0 %v653
  %671 = vmatpush.bf16.msra.mxu0 %v652
  %672 = vmatpush.bf16.msra.mxu0 %v651
  %673 = vmatpush.bf16.msra.mxu0 %v650
  %674 = vmatmul.bf16.gmra.mxu0 %v469
  %v675 = vpop.f32.mrf.mxu0
  %v676 = vadd.f32 %v616, %v675
  %v677 = vpop.f32.mrf.mxu0
  %v678 = vadd.f32 %v616, %v677
  %679 = vmatmul.bf16.gmra.mxu0 %v470
  %v680 = vpop.f32.mrf.mxu0
  %v681 = vadd.f32 %v616, %v680
  %v682 = vpop.f32.mrf.mxu0
  %v683 = vadd.f32 %v616, %v682
  %684 = vmatmul.bf16.gmra.mxu0 %v471
  %v685 = vpop.f32.mrf.mxu0
  %v686 = vadd.f32 %v616, %v685
  %v687 = vpop.f32.mrf.mxu0
  %v688 = vadd.f32 %v616, %v687
  %689 = vmatmul.bf16.gmra.mxu0 %v472
  %v690 = vpop.f32.mrf.mxu0
  %v691 = vadd.f32 %v616, %v690
  %v692 = vpop.f32.mrf.mxu0
  %v693 = vadd.f32 %v616, %v692
  %694 = vmatmul.bf16.gmra.mxu0 %v473
  %v695 = vpop.f32.mrf.mxu0
  %v696 = vadd.f32 %v616, %v695
  %v697 = vpop.f32.mrf.mxu0
  %v698 = vadd.f32 %v616, %v697
  %699 = vmatmul.bf16.gmra.mxu0 %v474
  %v700 = vpop.f32.mrf.mxu0
  %v701 = vadd.f32 %v616, %v700
  %v702 = vpop.f32.mrf.mxu0
  %v703 = vadd.f32 %v616, %v702
  %704 = vmatmul.bf16.gmra.mxu0 %v475
  %v705 = vpop.f32.mrf.mxu0
  %v706 = vadd.f32 %v616, %v705
  %v707 = vpop.f32.mrf.mxu0
  %v708 = vadd.f32 %v616, %v707
  %709 = vmatmul.bf16.gmra.mxu0 %v476
  %v710 = vpop.f32.mrf.mxu0
  %v711 = vadd.f32 %v616, %v710
  %v712 = vpop.f32.mrf.mxu0
  %v713 = vadd.f32 %v616, %v712
  %714 = vdwg.mxu0
  %715 = vmatpush.bf16.msra.mxu0 %v614
  %716 = vmatpush.bf16.msra.mxu0 %v613
  %717 = vmatpush.bf16.msra.mxu0 %v612
  %718 = vmatpush.bf16.msra.mxu0 %v611
  %719 = vmatpush.bf16.msra.mxu0 %v610
  %720 = vmatpush.bf16.msra.mxu0 %v609
  %721 = vmatpush.bf16.msra.mxu0 %v608
  %722 = vmatpush.bf16.msra.mxu0 %v607
  %723 = vmatmul.bf16.gmra.mxu0 %v388
  %v724 = vpop.f32.mrf.mxu0
  %v725 = vadd.f32 %v676, %v724
  %v726 = vpop.f32.mrf.mxu0
  %v727 = vadd.f32 %v678, %v726
  %728 = vmatmul.bf16.gmra.mxu0 %v389
  %v729 = vpop.f32.mrf.mxu0
  %v730 = vadd.f32 %v681, %v729
  %v731 = vpop.f32.mrf.mxu0
  %v732 = vadd.f32 %v683, %v731
  %733 = vmatmul.bf16.gmra.mxu0 %v390
  %v734 = vpop.f32.mrf.mxu0
  %v735 = vadd.f32 %v686, %v734
  %v736 = vpop.f32.mrf.mxu0
  %v737 = vadd.f32 %v688, %v736
  %738 = vmatmul.bf16.gmra.mxu0 %v391
  %v739 = vpop.f32.mrf.mxu0
  %v740 = vadd.f32 %v691, %v739
  %v741 = vpop.f32.mrf.mxu0
  %v742 = vadd.f32 %v693, %v741
  %743 = vmatmul.bf16.gmra.mxu0 %v392
  %v744 = vpop.f32.mrf.mxu0
  %v745 = vadd.f32 %v696, %v744
  %v746 = vpop.f32.mrf.mxu0
  %v747 = vadd.f32 %v698, %v746
  %748 = vmatmul.bf16.gmra.mxu0 %v393
  %v749 = vpop.f32.mrf.mxu0
  %v750 = vadd.f32 %v701, %v749
  %v751 = vpop.f32.mrf.mxu0
  %v752 = vadd.f32 %v703, %v751
  %753 = vmatmul.bf16.gmra.mxu0 %v394
  %v754 = vpop.f32.mrf.mxu0
  %v755 = vadd.f32 %v706, %v754
  %v756 = vpop.f32.mrf.mxu0
  %v757 = vadd.f32 %v708, %v756
  %758 = vmatmul.bf16.gmra.mxu0 %v395
  %v759 = vpop.f32.mrf.mxu0
  %v760 = vadd.f32 %v711, %v759
  %v761 = vpop.f32.mrf.mxu0
  %v762 = vadd.f32 %v713, %v761
  %763 = vdwg.mxu0
  %v764 = vmax.f32 %v725, 0.0
  %v765 = vmax.f32 %v727, 0.0
  %v766 = vmax.f32 %v730, 0.0
  %v767 = vmax.f32 %v732, 0.0
  %v768 = vmax.f32 %v735, 0.0
  %v769 = vmax.f32 %v737, 0.0
  %v770 = vmax.f32 %v740, 0.0
  %v771 = vmax.f32 %v742, 0.0
  %v772 = vmax.f32 %v745, 0.0
  %v773 = vmax.f32 %v747, 0.0
  %v774 = vmax.f32 %v750, 0.0
  %v775 = vmax.f32 %v752, 0.0
  %v776 = vmax.f32 %v755, 0.0
  %v777 = vmax.f32 %v757, 0.0
  %v778 = vmax.f32 %v760, 0.0
  %v779 = vmax.f32 %v762, 0.0
  %v780 = vpack.c.bf16 %v765, %v764
  %v781 = vpack.c.bf16 %v767, %v766
  %v782 = vpack.c.bf16 %v769, %v768
  %v783 = vpack.c.bf16 %v771, %v770
  %v784 = vpack.c.bf16 %v773, %v772
  %v785 = vpack.c.bf16 %v775, %v774
  %v786 = vpack.c.bf16 %v777, %v776
  %v787 = vpack.c.bf16 %v779, %v778
  %v788 = vld [vmem:[%s8] sm:$0xf]
  %v789 = vld [vmem:[%s8 + $0x4] sm:$0xf]
  %v790 = vld [vmem:[%s8 + $0x8] sm:$0xf]
  %v791 = vld [vmem:[%s8 + $0xc] sm:$0xf]
  %v792 = vld [vmem:[%s8 + $0x10] sm:$0xf]
  %v793 = vld [vmem:[%s8 + $0x14] sm:$0xf]
  %v794 = vld [vmem:[%s8 + $0x18] sm:$0xf]
  %v795 = vld [vmem:[%s8 + $0x1c] sm:$0xf]
  %v796 = vld [vmem:[%s8 + $0x20] sm:$0xf]
  %v797 = vld [vmem:[%s8 + $0x24] sm:$0xf]
  %v798 = vld [vmem:[%s8 + $0x28] sm:$0xf]
  %v799 = vld [vmem:[%s8 + $0x2c] sm:$0xf]
  %v800 = vld [vmem:[%s8 + $0x30] sm:$0xf]
  %v801 = vld [vmem:[%s8 + $0x34] sm:$0xf]
  %v802 = vld [vmem:[%s8 + $0x38] sm:$0xf]
  %v803 = vld [vmem:[%s8 + $0x3c] sm:$0xf]
  %v804 = vld [vmem:[%s9] sm:$0xf]
  %v805 = vld [vmem:[%s9 + $0x4] sm:$0xf]
  %v806 = vld [vmem:[%s9 + $0x8] sm:$0xf]
  %v807 = vld [vmem:[%s9 + $0xc] sm:$0xf]
  %v808 = vld [vmem:[%s9 + $0x10] sm:$0xf]
  %v809 = vld [vmem:[%s9 + $0x14] sm:$0xf]
  %v810 = vld [vmem:[%s9 + $0x18] sm:$0xf]
  %v811 = vld [vmem:[%s9 + $0x1c] sm:$0xf]
  %v812 = vld [vmem:[%s9 + $0x20] sm:$0xf]
  %v813 = vld [vmem:[%s9 + $0x24] sm:$0xf]
  %v814 = vld [vmem:[%s9 + $0x28] sm:$0xf]
  %v815 = vld [vmem:[%s9 + $0x2c] sm:$0xf]
  %v816 = vld [vmem:[%s9 + $0x30] sm:$0xf]
  %v817 = vld [vmem:[%s9 + $0x34] sm:$0xf]
  %v818 = vld [vmem:[%s9 + $0x38] sm:$0xf]
  %v819 = vld [vmem:[%s9 + $0x3c] sm:$0xf]
  %v820 = vld [vmem:[%s10] sm:$0x1]
  %v837 = vunpack.c.l.b16 %v788
  %v838 = vunpack.c.l.b16 %v789
  %v839 = vunpack.c.l.b16 %v790
  %v840 = vunpack.c.l.b16 %v791
  %v841 = vunpack.c.l.b16 %v792
  %v842 = vunpack.c.l.b16 %v793
  %v843 = vunpack.c.l.b16 %v794
  %v844 = vunpack.c.l.b16 %v795
  %v845 = vunpack.c.l.b16 %v796
  %v846 = vunpack.c.l.b16 %v797
  %v847 = vunpack.c.l.b16 %v798
  %v848 = vunpack.c.l.b16 %v799
  %v849 = vunpack.c.l.b16 %v800
  %v850 = vunpack.c.l.b16 %v801
  %v851 = vunpack.c.l.b16 %v802
  %v852 = vunpack.c.l.b16 %v803
  %v853 = vpack.c.b16 %v838, %v837
  %v854 = vpack.c.b16 %v840, %v839
  %v855 = vpack.c.b16 %v842, %v841
  %v856 = vpack.c.b16 %v844, %v843
  %v857 = vpack.c.b16 %v846, %v845
  %v858 = vpack.c.b16 %v848, %v847
  %v859 = vpack.c.b16 %v850, %v849
  %v860 = vpack.c.b16 %v852, %v851
  %869 = vmatpush.bf16.msra.mxu0 %v860
  %870 = vmatpush.bf16.msra.mxu0 %v859
  %871 = vmatpush.bf16.msra.mxu0 %v858
  %872 = vmatpush.bf16.msra.mxu0 %v857
  %873 = vmatpush.bf16.msra.mxu0 %v856
  %874 = vmatpush.bf16.msra.mxu0 %v855
  %875 = vmatpush.bf16.msra.mxu0 %v854
  %876 = vmatpush.bf16.msra.mxu0 %v853
  %877 = vmatmul.bf16.gmra.mxu0 %v780
  %v878 = vpop.f32.mrf.mxu0
  %v879 = vadd.f32 0.0, %v878
  %v880 = vpop.f32.mrf.mxu0
  %v881 = vadd.f32 0.0, %v880
  %882 = vmatmul.bf16.gmra.mxu0 %v781
  %v883 = vpop.f32.mrf.mxu0
  %v884 = vadd.f32 0.0, %v883
  %v885 = vpop.f32.mrf.mxu0
  %v886 = vadd.f32 0.0, %v885
  %887 = vmatmul.bf16.gmra.mxu0 %v782
  %v888 = vpop.f32.mrf.mxu0
  %v889 = vadd.f32 0.0, %v888
  %v890 = vpop.f32.mrf.mxu0
  %v891 = vadd.f32 0.0, %v890
  %892 = vmatmul.bf16.gmra.mxu0 %v783
  %v893 = vpop.f32.mrf.mxu0
  %v894 = vadd.f32 0.0, %v893
  %v895 = vpop.f32.mrf.mxu0
  %v896 = vadd.f32 0.0, %v895
  %897 = vmatmul.bf16.gmra.mxu0 %v784
  %v898 = vpop.f32.mrf.mxu0
  %v899 = vadd.f32 0.0, %v898
  %v900 = vpop.f32.mrf.mxu0
  %v901 = vadd.f32 0.0, %v900
  %902 = vmatmul.bf16.gmra.mxu0 %v785
  %v903 = vpop.f32.mrf.mxu0
  %v904 = vadd.f32 0.0, %v903
  %v905 = vpop.f32.mrf.mxu0
  %v906 = vadd.f32 0.0, %v905
  %907 = vmatmul.bf16.gmra.mxu0 %v786
  %v908 = vpop.f32.mrf.mxu0
  %v909 = vadd.f32 0.0, %v908
  %v910 = vpop.f32.mrf.mxu0
  %v911 = vadd.f32 0.0, %v910
  %912 = vmatmul.bf16.gmra.mxu0 %v787
  %v913 = vpop.f32.mrf.mxu0
  %v914 = vadd.f32 0.0, %v913
  %v915 = vpop.f32.mrf.mxu0
  %v916 = vadd.f32 0.0, %v915
  %917 = vdwg.mxu0
  %v918 = vpack.c.bf16 %v881, %v879
  %v919 = vpack.c.bf16 %v886, %v884
  %v920 = vpack.c.bf16 %v891, %v889
  %v921 = vpack.c.bf16 %v896, %v894
  %v922 = vpack.c.bf16 %v901, %v899
  %v923 = vpack.c.bf16 %v906, %v904
  %v924 = vpack.c.bf16 %v911, %v909
  %v925 = vpack.c.bf16 %v916, %v914
  %v927 = vperm.slane %v820, 0
  %v945 = vunpack.c.l.b16 %v804
  %v946 = vunpack.c.l.b16 %v805
  %v947 = vunpack.c.l.b16 %v806
  %v948 = vunpack.c.l.b16 %v807
  %v949 = vunpack.c.l.b16 %v808
  %v950 = vunpack.c.l.b16 %v809
  %v951 = vunpack.c.l.b16 %v810
  %v952 = vunpack.c.l.b16 %v811
  %v953 = vunpack.c.l.b16 %v812
  %v954 = vunpack.c.l.b16 %v813
  %v955 = vunpack.c.l.b16 %v814
  %v956 = vunpack.c.l.b16 %v815
  %v957 = vunpack.c.l.b16 %v816
  %v958 = vunpack.c.l.b16 %v817
  %v959 = vunpack.c.l.b16 %v818
  %v960 = vunpack.c.l.b16 %v819
  %v961 = vpack.c.b16 %v946, %v945
  %v962 = vpack.c.b16 %v948, %v947
  %v963 = vpack.c.b16 %v950, %v949
  %v964 = vpack.c.b16 %v952, %v951
  %v965 = vpack.c.b16 %v954, %v953
  %v966 = vpack.c.b16 %v956, %v955
  %v967 = vpack.c.b16 %v958, %v957
  %v968 = vpack.c.b16 %v960, %v959
  %977 = vmatpush.bf16.msra.mxu0 %v968
  %978 = vmatpush.bf16.msra.mxu0 %v967
  %979 = vmatpush.bf16.msra.mxu0 %v966
  %980 = vmatpush.bf16.msra.mxu0 %v965
  %981 = vmatpush.bf16.msra.mxu0 %v964
  %982 = vmatpush.bf16.msra.mxu0 %v963
  %983 = vmatpush.bf16.msra.mxu0 %v962
  %984 = vmatpush.bf16.msra.mxu0 %v961
  %985 = vmatmul.bf16.gmra.mxu0 %v780
  %v986 = vpop.f32.mrf.mxu0
  %v987 = vadd.f32 %v927, %v986
  %v988 = vpop.f32.mrf.mxu0
  %v989 = vadd.f32 %v927, %v988
  %990 = vmatmul.bf16.gmra.mxu0 %v781
  %v991 = vpop.f32.mrf.mxu0
  %v992 = vadd.f32 %v927, %v991
  %v993 = vpop.f32.mrf.mxu0
  %v994 = vadd.f32 %v927, %v993
  %995 = vmatmul.bf16.gmra.mxu0 %v782
  %v996 = vpop.f32.mrf.mxu0
  %v997 = vadd.f32 %v927, %v996
  %v998 = vpop.f32.mrf.mxu0
  %v999 = vadd.f32 %v927, %v998
  %1000 = vmatmul.bf16.gmra.mxu0 %v783
  %v1001 = vpop.f32.mrf.mxu0
  %v1002 = vadd.f32 %v927, %v1001
  %v1003 = vpop.f32.mrf.mxu0
  %v1004 = vadd.f32 %v927, %v1003
  %1005 = vmatmul.bf16.gmra.mxu0 %v784
  %v1006 = vpop.f32.mrf.mxu0
  %v1007 = vadd.f32 %v927, %v1006
  %v1008 = vpop.f32.mrf.mxu0
  %v1009 = vadd.f32 %v927, %v1008
  %1010 = vmatmul.bf16.gmra.mxu0 %v785
  %v1011 = vpop.f32.mrf.mxu0
  %v1012 = vadd.f32 %v927, %v1011
  %v1013 = vpop.f32.mrf.mxu0
  %v1014 = vadd.f32 %v927, %v1013
  %1015 = vmatmul.bf16.gmra.mxu0 %v786
  %v1016 = vpop.f32.mrf.mxu0
  %v1017 = vadd.f32 %v927, %v1016
  %v1018 = vpop.f32.mrf.mxu0
  %v1019 = vadd.f32 %v927, %v1018
  %1020 = vmatmul.bf16.gmra.mxu0 %v787
  %v1021 = vpop.f32.mrf.mxu0
  %v1022 = vadd.f32 %v927, %v1021
  %v1023 = vpop.f32.mrf.mxu0
  %v1024 = vadd.f32 %v927, %v1023
  %1025 = vdwg.mxu0
  %1026 = vmatpush.bf16.msra.mxu0 %v925
  %1027 = vmatpush.bf16.msra.mxu0 %v924
  %1028 = vmatpush.bf16.msra.mxu0 %v923
  %1029 = vmatpush.bf16.msra.mxu0 %v922
  %1030 = vmatpush.bf16.msra.mxu0 %v921
  %1031 = vmatpush.bf16.msra.mxu0 %v920
  %1032 = vmatpush.bf16.msra.mxu0 %v919
  %1033 = vmatpush.bf16.msra.mxu0 %v918
  %1034 = vmatmul.bf16.gmra.mxu0 %v388
  %v1035 = vpop.f32.mrf.mxu0
  %v1036 = vadd.f32 %v987, %v1035
  %v1037 = vpop.f32.mrf.mxu0
  %v1038 = vadd.f32 %v989, %v1037
  %1039 = vmatmul.bf16.gmra.mxu0 %v389
  %v1040 = vpop.f32.mrf.mxu0
  %v1041 = vadd.f32 %v992, %v1040
  %v1042 = vpop.f32.mrf.mxu0
  %v1043 = vadd.f32 %v994, %v1042
  %1044 = vmatmul.bf16.gmra.mxu0 %v390
  %v1045 = vpop.f32.mrf.mxu0
  %v1046 = vadd.f32 %v997, %v1045
  %v1047 = vpop.f32.mrf.mxu0
  %v1048 = vadd.f32 %v999, %v1047
  %1049 = vmatmul.bf16.gmra.mxu0 %v391
  %v1050 = vpop.f32.mrf.mxu0
  %v1051 = vadd.f32 %v1002, %v1050
  %v1052 = vpop.f32.mrf.mxu0
  %v1053 = vadd.f32 %v1004, %v1052
  %1054 = vmatmul.bf16.gmra.mxu0 %v392
  %v1055 = vpop.f32.mrf.mxu0
  %v1056 = vadd.f32 %v1007, %v1055
  %v1057 = vpop.f32.mrf.mxu0
  %v1058 = vadd.f32 %v1009, %v1057
  %1059 = vmatmul.bf16.gmra.mxu0 %v393
  %v1060 = vpop.f32.mrf.mxu0
  %v1061 = vadd.f32 %v1012, %v1060
  %v1062 = vpop.f32.mrf.mxu0
  %v1063 = vadd.f32 %v1014, %v1062
  %1064 = vmatmul.bf16.gmra.mxu0 %v394
  %v1065 = vpop.f32.mrf.mxu0
  %v1066 = vadd.f32 %v1017, %v1065
  %v1067 = vpop.f32.mrf.mxu0
  %v1068 = vadd.f32 %v1019, %v1067
  %1069 = vmatmul.bf16.gmra.mxu0 %v395
  %v1070 = vpop.f32.mrf.mxu0
  %v1071 = vadd.f32 %v1022, %v1070
  %v1072 = vpop.f32.mrf.mxu0
  %v1073 = vadd.f32 %v1024, %v1072
  %1074 = vdwg.mxu0
  %1075 = vst [vmem:[%s11] sm:$0xff] %v1036
  %1076 = vst [vmem:[%s11 + $0x8] sm:$0xff] %v1038
  %1077 = vst [vmem:[%s11 + $0x10] sm:$0xff] %v1041
  %1078 = vst [vmem:[%s11 + $0x18] sm:$0xff] %v1043
  %1079 = vst [vmem:[%s11 + $0x20] sm:$0xff] %v1046
  %1080 = vst [vmem:[%s11 + $0x28] sm:$0xff] %v1048
  %1081 = vst [vmem:[%s11 + $0x30] sm:$0xff] %v1051
  %1082 = vst [vmem:[%s11 + $0x38] sm:$0xff] %v1053
  %1083 = vst [vmem:[%s11 + $0x40] sm:$0xff] %v1056
  %1084 = vst [vmem:[%s11 + $0x48] sm:$0xff] %v1058
  %1085 = vst [vmem:[%s11 + $0x50] sm:$0xff] %v1061
  %1086 = vst [vmem:[%s11 + $0x58] sm:$0xff] %v1063
  %1087 = vst [vmem:[%s11 + $0x60] sm:$0xff] %v1066
  %1088 = vst [vmem:[%s11 + $0x68] sm:$0xff] %v1068
  %1089 = vst [vmem:[%s11 + $0x70] sm:$0xff] %v1071
  %1090 = vst [vmem:[%s11 + $0x78] sm:$0xff] %v1073
  // Predicated region
  $region46: #{sage_forward.1} parent=0 // pred_check
    _
  $region47: #{sage_forward.1} parent=0 // pred_check_branch
    %1092 = sbr.rel (0) target = $region49
  $region48: #{sage_forward.1} parent=0 // pred_region
    _
  $region49: #{sage_forward.1} parent=0 // pred_fallthru
    _
  // Predicated region
  $region50: #{sage_forward.1} parent=0 // pred_check
    _
  $region51: #{sage_forward.1} parent=0 // pred_check_branch
    %1094 = sbr.rel (0) target = $region53
  $region52: #{sage_forward.1} parent=0 // pred_region
    _
  $region53: #{sage_forward.1} parent=0 // pred_fallthru
    _

</llo_original>
